<compile_context>
chip_gen: v6e
topology: v6e:2x2x1
jax: 0.10.0
libtpu: 0.0.40
codegen_flags: <defaults>
</compile_context>

<pallas_src>
import functools

import jax
import jax.numpy as jnp
from jax import lax
from jax.experimental import pallas as pl
from jax.experimental.pallas import tpu as pltpu

BN_EPS = 1e-5


def projector_kernel(x_ref, a_ref, ve_ref, w_ref, o_ref, *, action_num):
    """x_ref: (B, F) f32 VMEM; a_ref: (B,) i32 SMEM; ve_ref: (A+13, F) f32 VMEM;
    w_ref: (7, 2F, F) bf16 VMEM; o_ref: (B, F) f32 VMEM."""
    B = x_ref.shape[0]
    F = x_ref.shape[1]
    x = x_ref[...]                                      # (B, F) f32

    # Row indices into the merged VE slab.
    base = action_num
    G1, BE1 = base + 0, base + 1
    G2, BE2 = base + 2, base + 3
    G3, BE3 = base + 4, base + 5
    G4, BE4 = base + 6, base + 7
    G5, BE5 = base + 8, base + 9
    G6, BE6 = base + 10, base + 11
    B7 = base + 12

    def vrow(r):                                        # (1, F) f32, static row
        return ve_ref[pl.ds(r, 1), :]

    def dot_l(h, layer):                                # bf16 MXU, f32 accumulate
        return jnp.dot(h.astype(jnp.bfloat16), w_ref[layer, :F, :],
                       preferred_element_type=jnp.float32)

    def bn(h, gamma, beta, relu):
        # PyTorch BatchNorm1d (training mode): centered (two-pass) biased batch
        # variance, eps=1e-5. All f32 on the VPU; rsqrt on the EUP.
        inv_n = 1.0 / h.shape[0]
        mean = jnp.sum(h, axis=0, keepdims=True) * inv_n
        d = h - mean
        var = jnp.sum(d * d, axis=0, keepdims=True) * inv_n
        y = d * (gamma * lax.rsqrt(var + BN_EPS)) + beta
        return jnp.maximum(y, 0.0) if relu else y

    # --- act_block: nn.Embedding gather, driven by SMEM scalar indices -------
    # (indices are clipped to [0, action_num) in the wrapper, matching the
    #  nn.Embedding in-range contract)
    ae = jnp.concatenate(
        [ve_ref[pl.ds(a_ref[i], 1), :] for i in range(B)], axis=0)   # (B, F)

    # --- trans_block ----------------------------------------------------------
    # cat([x, ae], -1) @ W1 as ONE MXU push (W1 packed as (2F, F)); the Linear
    # biases b1..b6 are dropped: they are absorbed by the training-mode BN mean.
    h = jnp.dot(jnp.concatenate([x, ae], axis=-1).astype(jnp.bfloat16),
                w_ref[0], preferred_element_type=jnp.float32)
    h = bn(h, vrow(G1), vrow(BE1), relu=True)
    h = bn(dot_l(h, 1), vrow(G2), vrow(BE2), relu=True)

    # --- project_block --------------------------------------------------------
    h = bn(dot_l(h, 2), vrow(G3), vrow(BE3), relu=True)
    h = bn(dot_l(h, 3), vrow(G4), vrow(BE4), relu=True)
    h = bn(dot_l(h, 4), vrow(G5), vrow(BE5), relu=False)   # last BN: no ReLU

    # --- project_head_block ---------------------------------------------------
    h = bn(dot_l(h, 5), vrow(G6), vrow(BE6), relu=True)
    h = dot_l(h, 6) + vrow(B7)                              # only live bias

    o_ref[...] = h.astype(o_ref.dtype)


def make_params(key, x_dim, units, z_size, action_num):
    """Deterministic synthetic parameters (shapes follow the nn.Module)."""
    ks = iter(jax.random.split(key, 32))

    def lin(fin, fout):
        w = jax.random.normal(next(ks), (fin, fout), jnp.float32) * 0.1
        b = jax.random.normal(next(ks), (1, fout), jnp.float32) * 0.1
        return w, b

    def bn(f):
        g = 1.0 + 0.1 * jax.random.normal(next(ks), (1, f), jnp.float32)
        b = 0.1 * jax.random.normal(next(ks), (1, f), jnp.float32)
        return g, b

    p = {}
    p["emb"] = jax.random.normal(next(ks), (action_num, units), jnp.float32) * 0.1
    w1, p["b1"] = lin(x_dim + units, units)      # LazyLinear(units): in = x_dim + units
    p["w1x"], p["w1a"] = w1[:x_dim], w1[x_dim:]
    p["g1"], p["be1"] = bn(units)
    p["w2"], p["b2"] = lin(units, z_size)
    p["g2"], p["be2"] = bn(z_size)
    p["w3"], p["b3"] = lin(z_size, units)
    p["g3"], p["be3"] = bn(units)
    p["w4"], p["b4"] = lin(units, units)
    p["g4"], p["be4"] = bn(units)
    p["w5"], p["b5"] = lin(units, units)
    p["g5"], p["be5"] = bn(units)
    p["w6"], p["b6"] = lin(units, units)
    p["g6"], p["be6"] = bn(units)
    p["w7"], p["b7"] = lin(units, units)
    return p


def pack_params(params, x_dim, units, z_size, action_num):
    """Pack all parameters into 2 slabs (do ONCE outside the step loop):
         W  : (7, 2F, F) bf16   all Linear weights, pre-transposed to (in, out)
         VE : (A+13, F)  f32    embedding rows; gamma/beta per BN; b7
    F is rounded up to a multiple of 128 for lane-dense vregs / stores."""
    F = ((max(x_dim, units, z_size) + 127) // 128) * 128

    def padv(v):                                   # (1, f) -> (1, F)
        out = jnp.zeros((1, F), jnp.float32)
        return out.at[:, : v.shape[1]].set(v)

    def padw(w):                                   # (fin, fout) -> (2F, F)
        out = jnp.zeros((2 * F, F), jnp.float32)
        return out.at[: w.shape[0], : w.shape[1]].set(w)

    # Layer-1 weight for the in-kernel cat([x, ae]): rows [0, x_dim) multiply x
    # (lanes 0..F of the concat), rows [F, F+units) multiply ae (lanes F..2F).
    w1 = jnp.zeros((2 * F, F), jnp.float32)
    w1 = w1.at[:x_dim, :units].set(params["w1x"])
    w1 = w1.at[F:F + units, :units].set(params["w1a"])

    W = jnp.stack([w1,
                   padw(params["w2"]), padw(params["w3"]), padw(params["w4"]),
                   padw(params["w5"]), padw(params["w6"]), padw(params["w7"])]
                  ).astype(jnp.bfloat16)                               # (7, 2F, F)

    emb = jnp.zeros((action_num, F), jnp.float32).at[:, :units].set(params["emb"])
    vec_keys = ["g1", "be1", "g2", "be2", "g3", "be3",
                "g4", "be4", "g5", "be5", "g6", "be6", "b7"]
    VE = jnp.concatenate([emb] + [padv(params[k]) for k in vec_keys], axis=0)

    return {"W": W, "VE": VE, "F": F, "units": units, "action_num": action_num}


def projector_forward(x, a, packed):
    B = x.shape[0]                     # batch axis is never padded (BN stats!)
    F = packed["F"]
    units = packed["units"]
    action_num = packed["action_num"]
    W, VE = packed["W"], packed["VE"]

    x_p = x.astype(jnp.float32)
    if x_p.shape[1] < F:
        x_p = jnp.pad(x_p, ((0, 0), (0, F - x_p.shape[1])))
    # nn.Embedding requires in-range indices; clip defensively (no VMEM bounds check).
    a_i = jnp.clip(a.astype(jnp.int32), 0, action_num - 1)

    kernel = functools.partial(projector_kernel, action_num=action_num)

    cost = pl.CostEstimate(
        flops=2 * B * F * F * 8,
        transcendentals=6 * F,
        bytes_accessed=int(W.size) * 2 + int(VE.size) * 4
                       + int(x_p.size) * 4 + B * 4 + B * F * 4,
    )

    out = pl.pallas_call(
        kernel,
        out_shape=jax.ShapeDtypeStruct((B, F), jnp.float32),
        in_specs=[
            pl.BlockSpec(memory_space=pltpu.MemorySpace.VMEM),   # x  (B, F)
            pl.BlockSpec(memory_space=pltpu.MemorySpace.SMEM),   # a  (B,) scalars
            pl.BlockSpec(memory_space=pltpu.MemorySpace.VMEM),   # VE slab
            pl.BlockSpec(memory_space=pltpu.MemorySpace.VMEM),   # W slab
        ],
        out_specs=pl.BlockSpec(memory_space=pltpu.MemorySpace.VMEM),
        cost_estimate=cost,
        # No grid: everything fits VMEM with huge margin at these widths.
        # If widths scale toward v7x's 32 MiB scoped default, stream W per
        # layer (pl.ANY + make_async_copy) and set vmem_limit_bytes explicitly.
    )(x_p, a_i, VE, W)
    return out[:, :units]


def projector_forward_ref(x, a, params):
    """Pure-JAX reference of the PyTorch module (training-mode BN, centered
    variance), with bf16-at-dot-boundary precision to mirror the kernel."""
    def bdot(h, w):
        return jnp.dot(h.astype(jnp.bfloat16), w.astype(jnp.bfloat16),
                       preferred_element_type=jnp.float32)

    def bn(h, g, b, relu):
        mean = jnp.mean(h, axis=0, keepdims=True)
        d = h - mean
        var = jnp.mean(d * d, axis=0, keepdims=True)
        y = d * (g * lax.rsqrt(var + BN_EPS)) + b
        return jnp.maximum(y, 0.0) if relu else y

    p = params
    ae = p["emb"][a]
    h = bdot(x, p["w1x"]) + bdot(ae, p["w1a"]) + p["b1"]
    h = bn(h, p["g1"], p["be1"], True)
    h = bn(bdot(h, p["w2"]) + p["b2"], p["g2"], p["be2"], True)
    h = bn(bdot(h, p["w3"]) + p["b3"], p["g3"], p["be3"], True)
    h = bn(bdot(h, p["w4"]) + p["b4"], p["g4"], p["be4"], True)
    h = bn(bdot(h, p["w5"]) + p["b5"], p["g5"], p["be5"], False)
    h = bn(bdot(h, p["w6"]) + p["b6"], p["g6"], p["be6"], True)
    return bdot(h, p["w7"]) + p["b7"]


if __name__ == "__main__":
    B, x_dim, units, z_size, action_num = 8, 32, 32, 32, 4

    key = jax.random.PRNGKey(0)
    kx, ka, kp = jax.random.split(key, 3)
    x = jax.random.normal(kx, (B, x_dim), jnp.float32)
    a = jax.random.randint(ka, (B,), 0, action_num, jnp.int32)
    params = make_params(kp, x_dim, units, z_size, action_num)
    packed = pack_params(params, x_dim, units, z_size, action_num)   # once, amortized

    out = projector_forward(x, a, packed)
    out = jax.block_until_ready(out)

    ref = projector_forward_ref(x, a, params)
    assert out.shape == (B, units)
    assert jnp.allclose(out, ref, atol=2e-2, rtol=2e-2), "mismatch vs JAX reference"

    # TODO(synk): BatchNorm1d running_mean/var buffer (momentum) updates are a
    # training side effect and are intentionally not materialized.
    print("KERNEL_OK")
</pallas_src>

<mosaic_0001>
module attributes {stable_mosaic.version = 11 : i64} {
  func.func @projector_kernel(%arg0: memref<8x128xf32, #tpu.memory_space<vmem>>, %arg1: memref<8xi32, #tpu.memory_space<smem>>, %arg2: memref<17x128xf32, #tpu.memory_space<vmem>>, %arg3: memref<7x256x128xbf16, #tpu.memory_space<vmem>>, %arg4: memref<8x128xf32, #tpu.memory_space<vmem>>) attributes {dimension_semantics = [], scalar_prefetch = 0 : i64, scratch_operands = 0 : i64, tpu.core_type = #tpu.core_type<tc>} {
    %c0 = arith.constant 0 : index
    %c0_0 = arith.constant 0 : index
    %0 = vector.load %arg0[%c0, %c0_0] : memref<8x128xf32, #tpu.memory_space<vmem>>, vector<8x128xf32>
    %c0_1 = arith.constant 0 : index
    %1 = memref.load %arg1[%c0_1] : memref<8xi32, #tpu.memory_space<smem>>
    %2 = arith.index_cast %1 : i32 to index
    %c0_2 = arith.constant 0 : index
    %3 = vector.load %arg2[%2, %c0_2] : memref<17x128xf32, #tpu.memory_space<vmem>>, vector<1x128xf32>
    %c1 = arith.constant 1 : index
    %4 = memref.load %arg1[%c1] : memref<8xi32, #tpu.memory_space<smem>>
    %5 = arith.index_cast %4 : i32 to index
    %c0_3 = arith.constant 0 : index
    %6 = vector.load %arg2[%5, %c0_3] : memref<17x128xf32, #tpu.memory_space<vmem>>, vector<1x128xf32>
    %c2 = arith.constant 2 : index
    %7 = memref.load %arg1[%c2] : memref<8xi32, #tpu.memory_space<smem>>
    %8 = arith.index_cast %7 : i32 to index
    %c0_4 = arith.constant 0 : index
    %9 = vector.load %arg2[%8, %c0_4] : memref<17x128xf32, #tpu.memory_space<vmem>>, vector<1x128xf32>
    %c3 = arith.constant 3 : index
    %10 = memref.load %arg1[%c3] : memref<8xi32, #tpu.memory_space<smem>>
    %11 = arith.index_cast %10 : i32 to index
    %c0_5 = arith.constant 0 : index
    %12 = vector.load %arg2[%11, %c0_5] : memref<17x128xf32, #tpu.memory_space<vmem>>, vector<1x128xf32>
    %c4 = arith.constant 4 : index
    %13 = memref.load %arg1[%c4] : memref<8xi32, #tpu.memory_space<smem>>
    %14 = arith.index_cast %13 : i32 to index
    %c0_6 = arith.constant 0 : index
    %15 = vector.load %arg2[%14, %c0_6] : memref<17x128xf32, #tpu.memory_space<vmem>>, vector<1x128xf32>
    %c5 = arith.constant 5 : index
    %16 = memref.load %arg1[%c5] : memref<8xi32, #tpu.memory_space<smem>>
    %17 = arith.index_cast %16 : i32 to index
    %c0_7 = arith.constant 0 : index
    %18 = vector.load %arg2[%17, %c0_7] : memref<17x128xf32, #tpu.memory_space<vmem>>, vector<1x128xf32>
    %c6 = arith.constant 6 : index
    %19 = memref.load %arg1[%c6] : memref<8xi32, #tpu.memory_space<smem>>
    %20 = arith.index_cast %19 : i32 to index
    %c0_8 = arith.constant 0 : index
    %21 = vector.load %arg2[%20, %c0_8] : memref<17x128xf32, #tpu.memory_space<vmem>>, vector<1x128xf32>
    %c7 = arith.constant 7 : index
    %22 = memref.load %arg1[%c7] : memref<8xi32, #tpu.memory_space<smem>>
    %23 = arith.index_cast %22 : i32 to index
    %c0_9 = arith.constant 0 : index
    %24 = vector.load %arg2[%23, %c0_9] : memref<17x128xf32, #tpu.memory_space<vmem>>, vector<1x128xf32>
    %25 = tpu.concatenate %3, %6, %9, %12, %15, %18, %21, %24 in 0 : vector<1x128xf32>, vector<1x128xf32>, vector<1x128xf32>, vector<1x128xf32>, vector<1x128xf32>, vector<1x128xf32>, vector<1x128xf32>, vector<1x128xf32> -> vector<8x128xf32>
    %26 = tpu.concatenate %0, %25 in 1 : vector<8x128xf32>, vector<8x128xf32> -> vector<8x256xf32>
    %27 = arith.truncf %26 : vector<8x256xf32> to vector<8x256xbf16>
    %c0_10 = arith.constant 0 : index
    %c0_11 = arith.constant 0 : index
    %c0_12 = arith.constant 0 : index
    %28 = vector.load %arg3[%c0_10, %c0_11, %c0_12] : memref<7x256x128xbf16, #tpu.memory_space<vmem>>, vector<1x256x128xbf16>
    %29 = vector.shape_cast %28 : vector<1x256x128xbf16> to vector<256x128xbf16>
    %cst = arith.constant dense<0.000000e+00> : vector<8x128xf32>
    %30 = tpu.matmul %27, %29, %cst {dimension_numbers = #tpu.dot_dimension_numbers<[1], [0], [0], [1], [0, 0, 1, 1], [], []>} : vector<8x256xbf16>, vector<256x128xbf16>, vector<8x128xf32> -> vector<8x128xf32>
    %c4_13 = arith.constant 4 : index
    %c0_14 = arith.constant 0 : index
    %31 = vector.load %arg2[%c4_13, %c0_14] : memref<17x128xf32, #tpu.memory_space<vmem>>, vector<1x128xf32>
    %c5_15 = arith.constant 5 : index
    %c0_16 = arith.constant 0 : index
    %32 = vector.load %arg2[%c5_15, %c0_16] : memref<17x128xf32, #tpu.memory_space<vmem>>, vector<1x128xf32>
    %cst_17 = arith.constant dense<0.000000e+00> : vector<128xf32>
    %33 = vector.multi_reduction <add>, %30, %cst_17 [0] : vector<8x128xf32> to vector<128xf32>
    %34 = vector.shape_cast %33 : vector<128xf32> to vector<1x128xf32>
    %cst_18 = arith.constant 1.250000e-01 : f32
    %35 = vector.broadcast %cst_18 : f32 to vector<1x128xf32>
    %36 = arith.mulf %34, %35 : vector<1x128xf32>
    %37 = vector.broadcast %36 : vector<1x128xf32> to vector<8x128xf32>
    %38 = arith.subf %30, %37 : vector<8x128xf32>
    %39 = arith.mulf %38, %38 : vector<8x128xf32>
    %cst_19 = arith.constant dense<0.000000e+00> : vector<128xf32>
    %40 = vector.multi_reduction <add>, %39, %cst_19 [0] : vector<8x128xf32> to vector<128xf32>
    %41 = vector.shape_cast %40 : vector<128xf32> to vector<1x128xf32>
    %cst_20 = arith.constant 1.250000e-01 : f32
    %42 = vector.broadcast %cst_20 : f32 to vector<1x128xf32>
    %43 = arith.mulf %41, %42 : vector<1x128xf32>
    %cst_21 = arith.constant 9.99999974E-6 : f32
    %44 = vector.broadcast %cst_21 : f32 to vector<1x128xf32>
    %45 = arith.addf %43, %44 : vector<1x128xf32>
    %46 = math.rsqrt %45 : vector<1x128xf32>
    %47 = arith.mulf %31, %46 : vector<1x128xf32>
    %48 = vector.broadcast %47 : vector<1x128xf32> to vector<8x128xf32>
    %49 = arith.mulf %38, %48 : vector<8x128xf32>
    %50 = vector.broadcast %32 : vector<1x128xf32> to vector<8x128xf32>
    %51 = arith.addf %49, %50 : vector<8x128xf32>
    %cst_22 = arith.constant 0.000000e+00 : f32
    %52 = vector.broadcast %cst_22 : f32 to vector<8x128xf32>
    %53 = arith.maximumf %51, %52 : vector<8x128xf32>
    %54 = arith.truncf %53 : vector<8x128xf32> to vector<8x128xbf16>
    %c1_23 = arith.constant 1 : index
    %c0_24 = arith.constant 0 : index
    %c0_25 = arith.constant 0 : index
    %55 = vector.load %arg3[%c1_23, %c0_24, %c0_25] : memref<7x256x128xbf16, #tpu.memory_space<vmem>>, vector<1x128x128xbf16>
    %56 = vector.shape_cast %55 : vector<1x128x128xbf16> to vector<128x128xbf16>
    %cst_26 = arith.constant dense<0.000000e+00> : vector<8x128xf32>
    %57 = tpu.matmul %54, %56, %cst_26 {dimension_numbers = #tpu.dot_dimension_numbers<[1], [0], [0], [1], [0, 0, 1, 1], [], []>} : vector<8x128xbf16>, vector<128x128xbf16>, vector<8x128xf32> -> vector<8x128xf32>
    %c6_27 = arith.constant 6 : index
    %c0_28 = arith.constant 0 : index
    %58 = vector.load %arg2[%c6_27, %c0_28] : memref<17x128xf32, #tpu.memory_space<vmem>>, vector<1x128xf32>
    %c7_29 = arith.constant 7 : index
    %c0_30 = arith.constant 0 : index
    %59 = vector.load %arg2[%c7_29, %c0_30] : memref<17x128xf32, #tpu.memory_space<vmem>>, vector<1x128xf32>
    %cst_31 = arith.constant dense<0.000000e+00> : vector<128xf32>
    %60 = vector.multi_reduction <add>, %57, %cst_31 [0] : vector<8x128xf32> to vector<128xf32>
    %61 = vector.shape_cast %60 : vector<128xf32> to vector<1x128xf32>
    %cst_32 = arith.constant 1.250000e-01 : f32
    %62 = vector.broadcast %cst_32 : f32 to vector<1x128xf32>
    %63 = arith.mulf %61, %62 : vector<1x128xf32>
    %64 = vector.broadcast %63 : vector<1x128xf32> to vector<8x128xf32>
    %65 = arith.subf %57, %64 : vector<8x128xf32>
    %66 = arith.mulf %65, %65 : vector<8x128xf32>
    %cst_33 = arith.constant dense<0.000000e+00> : vector<128xf32>
    %67 = vector.multi_reduction <add>, %66, %cst_33 [0] : vector<8x128xf32> to vector<128xf32>
    %68 = vector.shape_cast %67 : vector<128xf32> to vector<1x128xf32>
    %cst_34 = arith.constant 1.250000e-01 : f32
    %69 = vector.broadcast %cst_34 : f32 to vector<1x128xf32>
    %70 = arith.mulf %68, %69 : vector<1x128xf32>
    %cst_35 = arith.constant 9.99999974E-6 : f32
    %71 = vector.broadcast %cst_35 : f32 to vector<1x128xf32>
    %72 = arith.addf %70, %71 : vector<1x128xf32>
    %73 = math.rsqrt %72 : vector<1x128xf32>
    %74 = arith.mulf %58, %73 : vector<1x128xf32>
    %75 = vector.broadcast %74 : vector<1x128xf32> to vector<8x128xf32>
    %76 = arith.mulf %65, %75 : vector<8x128xf32>
    %77 = vector.broadcast %59 : vector<1x128xf32> to vector<8x128xf32>
    %78 = arith.addf %76, %77 : vector<8x128xf32>
    %cst_36 = arith.constant 0.000000e+00 : f32
    %79 = vector.broadcast %cst_36 : f32 to vector<8x128xf32>
    %80 = arith.maximumf %78, %79 : vector<8x128xf32>
    %81 = arith.truncf %80 : vector<8x128xf32> to vector<8x128xbf16>
    %c2_37 = arith.constant 2 : index
    %c0_38 = arith.constant 0 : index
    %c0_39 = arith.constant 0 : index
    %82 = vector.load %arg3[%c2_37, %c0_38, %c0_39] : memref<7x256x128xbf16, #tpu.memory_space<vmem>>, vector<1x128x128xbf16>
    %83 = vector.shape_cast %82 : vector<1x128x128xbf16> to vector<128x128xbf16>
    %cst_40 = arith.constant dense<0.000000e+00> : vector<8x128xf32>
    %84 = tpu.matmul %81, %83, %cst_40 {dimension_numbers = #tpu.dot_dimension_numbers<[1], [0], [0], [1], [0, 0, 1, 1], [], []>} : vector<8x128xbf16>, vector<128x128xbf16>, vector<8x128xf32> -> vector<8x128xf32>
    %c8 = arith.constant 8 : index
    %c0_41 = arith.constant 0 : index
    %85 = vector.load %arg2[%c8, %c0_41] : memref<17x128xf32, #tpu.memory_space<vmem>>, vector<1x128xf32>
    %c9 = arith.constant 9 : index
    %c0_42 = arith.constant 0 : index
    %86 = vector.load %arg2[%c9, %c0_42] : memref<17x128xf32, #tpu.memory_space<vmem>>, vector<1x128xf32>
    %cst_43 = arith.constant dense<0.000000e+00> : vector<128xf32>
    %87 = vector.multi_reduction <add>, %84, %cst_43 [0] : vector<8x128xf32> to vector<128xf32>
    %88 = vector.shape_cast %87 : vector<128xf32> to vector<1x128xf32>
    %cst_44 = arith.constant 1.250000e-01 : f32
    %89 = vector.broadcast %cst_44 : f32 to vector<1x128xf32>
    %90 = arith.mulf %88, %89 : vector<1x128xf32>
    %91 = vector.broadcast %90 : vector<1x128xf32> to vector<8x128xf32>
    %92 = arith.subf %84, %91 : vector<8x128xf32>
    %93 = arith.mulf %92, %92 : vector<8x128xf32>
    %cst_45 = arith.constant dense<0.000000e+00> : vector<128xf32>
    %94 = vector.multi_reduction <add>, %93, %cst_45 [0] : vector<8x128xf32> to vector<128xf32>
    %95 = vector.shape_cast %94 : vector<128xf32> to vector<1x128xf32>
    %cst_46 = arith.constant 1.250000e-01 : f32
    %96 = vector.broadcast %cst_46 : f32 to vector<1x128xf32>
    %97 = arith.mulf %95, %96 : vector<1x128xf32>
    %cst_47 = arith.constant 9.99999974E-6 : f32
    %98 = vector.broadcast %cst_47 : f32 to vector<1x128xf32>
    %99 = arith.addf %97, %98 : vector<1x128xf32>
    %100 = math.rsqrt %99 : vector<1x128xf32>
    %101 = arith.mulf %85, %100 : vector<1x128xf32>
    %102 = vector.broadcast %101 : vector<1x128xf32> to vector<8x128xf32>
    %103 = arith.mulf %92, %102 : vector<8x128xf32>
    %104 = vector.broadcast %86 : vector<1x128xf32> to vector<8x128xf32>
    %105 = arith.addf %103, %104 : vector<8x128xf32>
    %cst_48 = arith.constant 0.000000e+00 : f32
    %106 = vector.broadcast %cst_48 : f32 to vector<8x128xf32>
    %107 = arith.maximumf %105, %106 : vector<8x128xf32>
    %108 = arith.truncf %107 : vector<8x128xf32> to vector<8x128xbf16>
    %c3_49 = arith.constant 3 : index
    %c0_50 = arith.constant 0 : index
    %c0_51 = arith.constant 0 : index
    %109 = vector.load %arg3[%c3_49, %c0_50, %c0_51] : memref<7x256x128xbf16, #tpu.memory_space<vmem>>, vector<1x128x128xbf16>
    %110 = vector.shape_cast %109 : vector<1x128x128xbf16> to vector<128x128xbf16>
    %cst_52 = arith.constant dense<0.000000e+00> : vector<8x128xf32>
    %111 = tpu.matmul %108, %110, %cst_52 {dimension_numbers = #tpu.dot_dimension_numbers<[1], [0], [0], [1], [0, 0, 1, 1], [], []>} : vector<8x128xbf16>, vector<128x128xbf16>, vector<8x128xf32> -> vector<8x128xf32>
    %c10 = arith.constant 10 : index
    %c0_53 = arith.constant 0 : index
    %112 = vector.load %arg2[%c10, %c0_53] : memref<17x128xf32, #tpu.memory_space<vmem>>, vector<1x128xf32>
    %c11 = arith.constant 11 : index
    %c0_54 = arith.constant 0 : index
    %113 = vector.load %arg2[%c11, %c0_54] : memref<17x128xf32, #tpu.memory_space<vmem>>, vector<1x128xf32>
    %cst_55 = arith.constant dense<0.000000e+00> : vector<128xf32>
    %114 = vector.multi_reduction <add>, %111, %cst_55 [0] : vector<8x128xf32> to vector<128xf32>
    %115 = vector.shape_cast %114 : vector<128xf32> to vector<1x128xf32>
    %cst_56 = arith.constant 1.250000e-01 : f32
    %116 = vector.broadcast %cst_56 : f32 to vector<1x128xf32>
    %117 = arith.mulf %115, %116 : vector<1x128xf32>
    %118 = vector.broadcast %117 : vector<1x128xf32> to vector<8x128xf32>
    %119 = arith.subf %111, %118 : vector<8x128xf32>
    %120 = arith.mulf %119, %119 : vector<8x128xf32>
    %cst_57 = arith.constant dense<0.000000e+00> : vector<128xf32>
    %121 = vector.multi_reduction <add>, %120, %cst_57 [0] : vector<8x128xf32> to vector<128xf32>
    %122 = vector.shape_cast %121 : vector<128xf32> to vector<1x128xf32>
    %cst_58 = arith.constant 1.250000e-01 : f32
    %123 = vector.broadcast %cst_58 : f32 to vector<1x128xf32>
    %124 = arith.mulf %122, %123 : vector<1x128xf32>
    %cst_59 = arith.constant 9.99999974E-6 : f32
    %125 = vector.broadcast %cst_59 : f32 to vector<1x128xf32>
    %126 = arith.addf %124, %125 : vector<1x128xf32>
    %127 = math.rsqrt %126 : vector<1x128xf32>
    %128 = arith.mulf %112, %127 : vector<1x128xf32>
    %129 = vector.broadcast %128 : vector<1x128xf32> to vector<8x128xf32>
    %130 = arith.mulf %119, %129 : vector<8x128xf32>
    %131 = vector.broadcast %113 : vector<1x128xf32> to vector<8x128xf32>
    %132 = arith.addf %130, %131 : vector<8x128xf32>
    %cst_60 = arith.constant 0.000000e+00 : f32
    %133 = vector.broadcast %cst_60 : f32 to vector<8x128xf32>
    %134 = arith.maximumf %132, %133 : vector<8x128xf32>
    %135 = arith.truncf %134 : vector<8x128xf32> to vector<8x128xbf16>
    %c4_61 = arith.constant 4 : index
    %c0_62 = arith.constant 0 : index
    %c0_63 = arith.constant 0 : index
    %136 = vector.load %arg3[%c4_61, %c0_62, %c0_63] : memref<7x256x128xbf16, #tpu.memory_space<vmem>>, vector<1x128x128xbf16>
    %137 = vector.shape_cast %136 : vector<1x128x128xbf16> to vector<128x128xbf16>
    %cst_64 = arith.constant dense<0.000000e+00> : vector<8x128xf32>
    %138 = tpu.matmul %135, %137, %cst_64 {dimension_numbers = #tpu.dot_dimension_numbers<[1], [0], [0], [1], [0, 0, 1, 1], [], []>} : vector<8x128xbf16>, vector<128x128xbf16>, vector<8x128xf32> -> vector<8x128xf32>
    %c12 = arith.constant 12 : index
    %c0_65 = arith.constant 0 : index
    %139 = vector.load %arg2[%c12, %c0_65] : memref<17x128xf32, #tpu.memory_space<vmem>>, vector<1x128xf32>
    %c13 = arith.constant 13 : index
    %c0_66 = arith.constant 0 : index
    %140 = vector.load %arg2[%c13, %c0_66] : memref<17x128xf32, #tpu.memory_space<vmem>>, vector<1x128xf32>
    %cst_67 = arith.constant dense<0.000000e+00> : vector<128xf32>
    %141 = vector.multi_reduction <add>, %138, %cst_67 [0] : vector<8x128xf32> to vector<128xf32>
    %142 = vector.shape_cast %141 : vector<128xf32> to vector<1x128xf32>
    %cst_68 = arith.constant 1.250000e-01 : f32
    %143 = vector.broadcast %cst_68 : f32 to vector<1x128xf32>
    %144 = arith.mulf %142, %143 : vector<1x128xf32>
    %145 = vector.broadcast %144 : vector<1x128xf32> to vector<8x128xf32>
    %146 = arith.subf %138, %145 : vector<8x128xf32>
    %147 = arith.mulf %146, %146 : vector<8x128xf32>
    %cst_69 = arith.constant dense<0.000000e+00> : vector<128xf32>
    %148 = vector.multi_reduction <add>, %147, %cst_69 [0] : vector<8x128xf32> to vector<128xf32>
    %149 = vector.shape_cast %148 : vector<128xf32> to vector<1x128xf32>
    %cst_70 = arith.constant 1.250000e-01 : f32
    %150 = vector.broadcast %cst_70 : f32 to vector<1x128xf32>
    %151 = arith.mulf %149, %150 : vector<1x128xf32>
    %cst_71 = arith.constant 9.99999974E-6 : f32
    %152 = vector.broadcast %cst_71 : f32 to vector<1x128xf32>
    %153 = arith.addf %151, %152 : vector<1x128xf32>
    %154 = math.rsqrt %153 : vector<1x128xf32>
    %155 = arith.mulf %139, %154 : vector<1x128xf32>
    %156 = vector.broadcast %155 : vector<1x128xf32> to vector<8x128xf32>
    %157 = arith.mulf %146, %156 : vector<8x128xf32>
    %158 = vector.broadcast %140 : vector<1x128xf32> to vector<8x128xf32>
    %159 = arith.addf %157, %158 : vector<8x128xf32>
    %160 = arith.truncf %159 : vector<8x128xf32> to vector<8x128xbf16>
    %c5_72 = arith.constant 5 : index
    %c0_73 = arith.constant 0 : index
    %c0_74 = arith.constant 0 : index
    %161 = vector.load %arg3[%c5_72, %c0_73, %c0_74] : memref<7x256x128xbf16, #tpu.memory_space<vmem>>, vector<1x128x128xbf16>
    %162 = vector.shape_cast %161 : vector<1x128x128xbf16> to vector<128x128xbf16>
    %cst_75 = arith.constant dense<0.000000e+00> : vector<8x128xf32>
    %163 = tpu.matmul %160, %162, %cst_75 {dimension_numbers = #tpu.dot_dimension_numbers<[1], [0], [0], [1], [0, 0, 1, 1], [], []>} : vector<8x128xbf16>, vector<128x128xbf16>, vector<8x128xf32> -> vector<8x128xf32>
    %c14 = arith.constant 14 : index
    %c0_76 = arith.constant 0 : index
    %164 = vector.load %arg2[%c14, %c0_76] : memref<17x128xf32, #tpu.memory_space<vmem>>, vector<1x128xf32>
    %c15 = arith.constant 15 : index
    %c0_77 = arith.constant 0 : index
    %165 = vector.load %arg2[%c15, %c0_77] : memref<17x128xf32, #tpu.memory_space<vmem>>, vector<1x128xf32>
    %cst_78 = arith.constant dense<0.000000e+00> : vector<128xf32>
    %166 = vector.multi_reduction <add>, %163, %cst_78 [0] : vector<8x128xf32> to vector<128xf32>
    %167 = vector.shape_cast %166 : vector<128xf32> to vector<1x128xf32>
    %cst_79 = arith.constant 1.250000e-01 : f32
    %168 = vector.broadcast %cst_79 : f32 to vector<1x128xf32>
    %169 = arith.mulf %167, %168 : vector<1x128xf32>
    %170 = vector.broadcast %169 : vector<1x128xf32> to vector<8x128xf32>
    %171 = arith.subf %163, %170 : vector<8x128xf32>
    %172 = arith.mulf %171, %171 : vector<8x128xf32>
    %cst_80 = arith.constant dense<0.000000e+00> : vector<128xf32>
    %173 = vector.multi_reduction <add>, %172, %cst_80 [0] : vector<8x128xf32> to vector<128xf32>
    %174 = vector.shape_cast %173 : vector<128xf32> to vector<1x128xf32>
    %cst_81 = arith.constant 1.250000e-01 : f32
    %175 = vector.broadcast %cst_81 : f32 to vector<1x128xf32>
    %176 = arith.mulf %174, %175 : vector<1x128xf32>
    %cst_82 = arith.constant 9.99999974E-6 : f32
    %177 = vector.broadcast %cst_82 : f32 to vector<1x128xf32>
    %178 = arith.addf %176, %177 : vector<1x128xf32>
    %179 = math.rsqrt %178 : vector<1x128xf32>
    %180 = arith.mulf %164, %179 : vector<1x128xf32>
    %181 = vector.broadcast %180 : vector<1x128xf32> to vector<8x128xf32>
    %182 = arith.mulf %171, %181 : vector<8x128xf32>
    %183 = vector.broadcast %165 : vector<1x128xf32> to vector<8x128xf32>
    %184 = arith.addf %182, %183 : vector<8x128xf32>
    %cst_83 = arith.constant 0.000000e+00 : f32
    %185 = vector.broadcast %cst_83 : f32 to vector<8x128xf32>
    %186 = arith.maximumf %184, %185 : vector<8x128xf32>
    %187 = arith.truncf %186 : vector<8x128xf32> to vector<8x128xbf16>
    %c6_84 = arith.constant 6 : index
    %c0_85 = arith.constant 0 : index
    %c0_86 = arith.constant 0 : index
    %188 = vector.load %arg3[%c6_84, %c0_85, %c0_86] : memref<7x256x128xbf16, #tpu.memory_space<vmem>>, vector<1x128x128xbf16>
    %189 = vector.shape_cast %188 : vector<1x128x128xbf16> to vector<128x128xbf16>
    %cst_87 = arith.constant dense<0.000000e+00> : vector<8x128xf32>
    %190 = tpu.matmul %187, %189, %cst_87 {dimension_numbers = #tpu.dot_dimension_numbers<[1], [0], [0], [1], [0, 0, 1, 1], [], []>} : vector<8x128xbf16>, vector<128x128xbf16>, vector<8x128xf32> -> vector<8x128xf32>
    %c16 = arith.constant 16 : index
    %c0_88 = arith.constant 0 : index
    %191 = vector.load %arg2[%c16, %c0_88] : memref<17x128xf32, #tpu.memory_space<vmem>>, vector<1x128xf32>
    %192 = vector.broadcast %191 : vector<1x128xf32> to vector<8x128xf32>
    %193 = arith.addf %190, %192 : vector<8x128xf32>
    %c0_89 = arith.constant 0 : index
    %c0_90 = arith.constant 0 : index
    %194 = vector.load %arg4[%c0_89, %c0_90] : memref<8x128xf32, #tpu.memory_space<vmem>>, vector<8x128xf32>
    tpu.vector_store %arg4[%c0_89, %c0_90], %193 {strides = array<i32>} : memref<8x128xf32, #tpu.memory_space<vmem>>, vector<8x128xf32>,
    return
  }
}

</mosaic_0001>

<llo_original>
// kernel: tpu_custom_call.1
$region0: #{tpu_custom_call.1}
  #allocation0 [shape = 'u32[]', space=smem, size = 0x4, offset = 0x4, fixed_abs, tag = 'smem constant byte address 0x4 - core index']
  #allocation1 [shape = 'u32[144,128]{1,0:T(1,128)}', space=vmem, size = 0x12000, scoped, tag = 'internal scratch']
  %s0 = inlined_call_operand.hbm [shape: f32[8,128], index: 0, kind: input, shape index: {}]
  %s1 = inlined_call_operand.vmem [shape: s32[8], index: 1, kind: input, shape index: {}]
  %s2 = inlined_call_operand.hbm [shape: f32[17,128], index: 2, kind: input, shape index: {}]
  %s3 = inlined_call_operand.hbm [shape: bf16[7,256,128], index: 3, kind: input, shape index: {}]
  %s4 = inlined_call_operand.hbm [shape: f32[8,128], index: 4, kind: output, shape index: {}]
  %s5 = sld [smem:[#allocation0]]
  $region42: #{tpu_custom_call.1} parent=0
    _
  %s7 = ssub.s32 1, %s5
  %s8 = scalar_select 0, %s7, %s5
  $region1: #{tpu_custom_call.1} parent=0
    #allocation2 [shape = 'u8[4096]{0}', space=vmem, size = 0x1000, scoped, tag = 'input window, operand 0, single buffered']
    #allocation3 [shape = 's32[1]{0}', space=sflag, size = 0x4, scoped, tag = 'scoped memory for tpu_custom_call.1']
    #allocation4 [shape = 's32[1]{0}', space=sflag, size = 0x4, scoped, tag = 'scoped memory for tpu_custom_call.1']
    #allocation5 [shape = 's32[1]{0}', space=sflag, size = 0x4, scoped, tag = 'scoped memory for tpu_custom_call.1']
    #allocation6 [shape = 'u8[512]{0}', space=smem, size = 0x200, scoped, tag = 'input window, operand 1, single buffered']
    #allocation7 [shape = 'u8[12288]{0}', space=vmem, size = 0x3000, scoped, tag = 'input window, operand 2, single buffered']
    #allocation8 [shape = 's32[1]{0}', space=sflag, size = 0x4, scoped, tag = 'scoped memory for tpu_custom_call.1']
    #allocation9 [shape = 'u8[458752]{0}', space=vmem, size = 0x70000, scoped, tag = 'input window, operand 3, single buffered']
    #allocation10 [shape = 'u8[4096]{0}', space=vmem, size = 0x1000, scoped, tag = 'output window, operand 0, single buffered']
    %9 = vsyncpa [#allocation3], 0
    %10 = vsyncpa [#allocation5], 0
    %11 = vsyncpa [#allocation8], 0
    %12 = vsyncpa [#allocation4], 0
    // Predicated region
    $region2: #{tpu_custom_call.1} parent=1 // pred_check
      _
    $region3: #{tpu_custom_call.1} parent=1 // pred_check_branch
      %14 = sbr.rel (0) target = $region5
    $region4: #{tpu_custom_call.1} parent=1 // pred_region
      %s16 = ssub.s32 128, 128
      %17 = vsyncadd [#allocation3], %s16
      %s19 = sshll.u32 [#allocation2], 4
      %s20 = int_to_ptr.vmem [resolvable:$true] %s19
      %22 = dma.hbm_to_vmem [thread:$0]  %s0, 128, %s20, [#allocation3]
    $region5: #{tpu_custom_call.1} parent=1 // pred_fallthru
      _
    // Predicated region
    $region6: #{tpu_custom_call.1} parent=1 // pred_check
      _
    $region7: #{tpu_custom_call.1} parent=1 // pred_check_branch
      %24 = sbr.rel (0) target = $region9
    $region8: #{tpu_custom_call.1} parent=1 // pred_region
      %s26 = ssub.s32 16, 16
      %27 = vsyncadd [#allocation5], %s26
      %s29 = sshll.u32 %s1, 4
      %s30 = int_to_ptr.vmem [resolvable:$true] %s29
      %32 = dma.vmem_to_smem %s30, 16, [#allocation6], [#allocation5]
    $region9: #{tpu_custom_call.1} parent=1 // pred_fallthru
      _
    // Predicated region
    $region10: #{tpu_custom_call.1} parent=1 // pred_check
      _
    $region11: #{tpu_custom_call.1} parent=1 // pred_check_branch
      %34 = sbr.rel (0) target = $region13
    $region12: #{tpu_custom_call.1} parent=1 // pred_region
      %s36 = ssub.s32 384, 384
      %37 = vsyncadd [#allocation8], %s36
      %s38 = sshll.u32 [#allocation7], 4
      %s39 = int_to_ptr.vmem [resolvable:$true] %s38
      %44 = dma.hbm_to_vmem [thread:$0]  %s2, 384, %s39, [#allocation8], 128, 128, 8
    $region13: #{tpu_custom_call.1} parent=1 // pred_fallthru
      _
    // Predicated region
    $region14: #{tpu_custom_call.1} parent=1 // pred_check
      _
    $region15: #{tpu_custom_call.1} parent=1 // pred_check_branch
      %46 = sbr.rel (0) target = $region17
    $region16: #{tpu_custom_call.1} parent=1 // pred_region
      %s48 = ssub.s32 14336, 14336
      %49 = vsyncadd [#allocation8], %s48
      %s50 = sshll.u32 [#allocation9], 4
      %s51 = int_to_ptr.vmem [resolvable:$true] %s50
      %56 = dma.hbm_to_vmem [thread:$0]  %s3, 14336, %s51, [#allocation8], 64, 64, 4
    $region17: #{tpu_custom_call.1} parent=1 // pred_fallthru
      _
    // Predicated region
    $region18: #{tpu_custom_call.1} parent=1 // pred_check
      _
    $region19: #{tpu_custom_call.1} parent=1 // pred_check_branch
      %58 = sbr.rel (0) target = $region21
    $region20: #{tpu_custom_call.1} parent=1 // pred_region
      %59 = dma.done [#allocation3], 128
    $region21: #{tpu_custom_call.1} parent=1 // pred_fallthru
      _
    // Predicated region
    $region22: #{tpu_custom_call.1} parent=1 // pred_check
      _
    $region23: #{tpu_custom_call.1} parent=1 // pred_check_branch
      %61 = sbr.rel (0) target = $region25
    $region24: #{tpu_custom_call.1} parent=1 // pred_region
      %62 = dma.done [#allocation5], 16
    $region25: #{tpu_custom_call.1} parent=1 // pred_fallthru
      _
    // Predicated region
    $region26: #{tpu_custom_call.1} parent=1 // pred_check
      _
    $region27: #{tpu_custom_call.1} parent=1 // pred_check_branch
      %64 = sbr.rel (0) target = $region29
    $region28: #{tpu_custom_call.1} parent=1 // pred_region
      %65 = dma.done [#allocation8], 384
    $region29: #{tpu_custom_call.1} parent=1 // pred_fallthru
      _
    // Predicated region
    $region30: #{tpu_custom_call.1} parent=1 // pred_check
      _
    $region31: #{tpu_custom_call.1} parent=1 // pred_check_branch
      %67 = sbr.rel (0) target = $region33
    $region32: #{tpu_custom_call.1} parent=1 // pred_region
      %68 = dma.done [#allocation8], 14336
    $region33: #{tpu_custom_call.1} parent=1 // pred_fallthru
      _
    %69 = sfence
    %v71 = vld [vmem:[#allocation2] sm:$0xff]
    %s72 = sld [smem:[#allocation6]]
    %s73 = scalar_lea.vmem [#allocation7], %s72
    %v74 = vld [vmem:[%s73] sm:$0x1]
    %s75 = sld [smem:[#allocation6 + $0x1]]
    %s76 = scalar_lea.vmem [#allocation7], %s75
    %v77 = vld [vmem:[%s76] sm:$0x1]
    %s78 = sld [smem:[#allocation6 + $0x2]]
    %s79 = scalar_lea.vmem [#allocation7], %s78
    %v80 = vld [vmem:[%s79] sm:$0x1]
    %s81 = sld [smem:[#allocation6 + $0x3]]
    %s82 = scalar_lea.vmem [#allocation7], %s81
    %v83 = vld [vmem:[%s82] sm:$0x1]
    %s84 = sld [smem:[#allocation6 + $0x4]]
    %s85 = scalar_lea.vmem [#allocation7], %s84
    %v86 = vld [vmem:[%s85] sm:$0x1]
    %s87 = sld [smem:[#allocation6 + $0x5]]
    %s88 = scalar_lea.vmem [#allocation7], %s87
    %v89 = vld [vmem:[%s88] sm:$0x1]
    %s90 = sld [smem:[#allocation6 + $0x6]]
    %s91 = scalar_lea.vmem [#allocation7], %s90
    %v92 = vld [vmem:[%s91] sm:$0x1]
    %s93 = sld [smem:[#allocation6 + $0x7]]
    %s94 = scalar_lea.vmem [#allocation7], %s93
    %v95 = vld [vmem:[%s94] sm:$0x1]
    %v97 = vrot.slane %v77, 7
    %v100 = vrot.slane %v80, 6
    %v103 = vrot.slane %v83, 5
    %v106 = vrot.slane %v86, 4
    %v109 = vrot.slane %v89, 3
    %v112 = vrot.slane %v92, 2
    %v115 = vrot.slane %v95, 1
    %vm117 = vcmask 1040384
    %v118 = vsel %vm117, %v74, %v97
    %vm119 = vcmask 1041408
    %v120 = vsel %vm119, %v118, %v100
    %vm121 = vcmask 1042432
    %v122 = vsel %vm121, %v120, %v103
    %vm123 = vcmask 1043456
    %v124 = vsel %vm123, %v122, %v106
    %vm125 = vcmask 1044480
    %v126 = vsel %vm125, %v124, %v109
    %vm127 = vcmask 1045504
    %v128 = vsel %vm127, %v126, %v112
    %vm129 = vcmask 1046528
    %v130 = vsel %vm129, %v128, %v115
    %v131 = vpack.c.bf16 %v71, %v71
    %v132 = vpack.c.bf16 %v130, %v130
    %v133 = vld [vmem:[#allocation9] sm:$0xf]
    %v134 = vld [vmem:[#allocation9 + $0x4] sm:$0xf]
    %v135 = vld [vmem:[#allocation9 + $0x8] sm:$0xf]
    %v136 = vld [vmem:[#allocation9 + $0xc] sm:$0xf]
    %v137 = vld [vmem:[#allocation9 + $0x10] sm:$0xf]
    %v138 = vld [vmem:[#allocation9 + $0x14] sm:$0xf]
    %v139 = vld [vmem:[#allocation9 + $0x18] sm:$0xf]
    %v140 = vld [vmem:[#allocation9 + $0x1c] sm:$0xf]
    %v141 = vld [vmem:[#allocation9 + $0x20] sm:$0xf]
    %v142 = vld [vmem:[#allocation9 + $0x24] sm:$0xf]
    %v143 = vld [vmem:[#allocation9 + $0x28] sm:$0xf]
    %v144 = vld [vmem:[#allocation9 + $0x2c] sm:$0xf]
    %v145 = vld [vmem:[#allocation9 + $0x30] sm:$0xf]
    %v146 = vld [vmem:[#allocation9 + $0x34] sm:$0xf]
    %v147 = vld [vmem:[#allocation9 + $0x38] sm:$0xf]
    %v148 = vld [vmem:[#allocation9 + $0x3c] sm:$0xf]
    %v149 = vld [vmem:[#allocation9 + $0x40] sm:$0xf]
    %v150 = vld [vmem:[#allocation9 + $0x44] sm:$0xf]
    %v151 = vld [vmem:[#allocation9 + $0x48] sm:$0xf]
    %v152 = vld [vmem:[#allocation9 + $0x4c] sm:$0xf]
    %v153 = vld [vmem:[#allocation9 + $0x50] sm:$0xf]
    %v154 = vld [vmem:[#allocation9 + $0x54] sm:$0xf]
    %v155 = vld [vmem:[#allocation9 + $0x58] sm:$0xf]
    %v156 = vld [vmem:[#allocation9 + $0x5c] sm:$0xf]
    %v157 = vld [vmem:[#allocation9 + $0x60] sm:$0xf]
    %v158 = vld [vmem:[#allocation9 + $0x64] sm:$0xf]
    %v159 = vld [vmem:[#allocation9 + $0x68] sm:$0xf]
    %v160 = vld [vmem:[#allocation9 + $0x6c] sm:$0xf]
    %v161 = vld [vmem:[#allocation9 + $0x70] sm:$0xf]
    %v162 = vld [vmem:[#allocation9 + $0x74] sm:$0xf]
    %v163 = vld [vmem:[#allocation9 + $0x78] sm:$0xf]
    %v164 = vld [vmem:[#allocation9 + $0x7c] sm:$0xf]
    %v197 = vunpack.c.l.b16 %v133
    %v198 = vunpack.c.l.b16 %v134
    %v199 = vunpack.c.l.b16 %v135
    %v200 = vunpack.c.l.b16 %v136
    %v201 = vunpack.c.l.b16 %v137
    %v202 = vunpack.c.l.b16 %v138
    %v203 = vunpack.c.l.b16 %v139
    %v204 = vunpack.c.l.b16 %v140
    %v205 = vunpack.c.l.b16 %v141
    %v206 = vunpack.c.l.b16 %v142
    %v207 = vunpack.c.l.b16 %v143
    %v208 = vunpack.c.l.b16 %v144
    %v209 = vunpack.c.l.b16 %v145
    %v210 = vunpack.c.l.b16 %v146
    %v211 = vunpack.c.l.b16 %v147
    %v212 = vunpack.c.l.b16 %v148
    %v213 = vunpack.c.l.b16 %v149
    %v214 = vunpack.c.l.b16 %v150
    %v215 = vunpack.c.l.b16 %v151
    %v216 = vunpack.c.l.b16 %v152
    %v217 = vunpack.c.l.b16 %v153
    %v218 = vunpack.c.l.b16 %v154
    %v219 = vunpack.c.l.b16 %v155
    %v220 = vunpack.c.l.b16 %v156
    %v221 = vunpack.c.l.b16 %v157
    %v222 = vunpack.c.l.b16 %v158
    %v223 = vunpack.c.l.b16 %v159
    %v224 = vunpack.c.l.b16 %v160
    %v225 = vunpack.c.l.b16 %v161
    %v226 = vunpack.c.l.b16 %v162
    %v227 = vunpack.c.l.b16 %v163
    %v228 = vunpack.c.l.b16 %v164
    %v229 = vpack.c.b16 %v198, %v197
    %v230 = vpack.c.b16 %v200, %v199
    %v231 = vpack.c.b16 %v202, %v201
    %v232 = vpack.c.b16 %v204, %v203
    %v233 = vpack.c.b16 %v206, %v205
    %v234 = vpack.c.b16 %v208, %v207
    %v235 = vpack.c.b16 %v210, %v209
    %v236 = vpack.c.b16 %v212, %v211
    %v237 = vpack.c.b16 %v214, %v213
    %v238 = vpack.c.b16 %v216, %v215
    %v239 = vpack.c.b16 %v218, %v217
    %v240 = vpack.c.b16 %v220, %v219
    %v241 = vpack.c.b16 %v222, %v221
    %v242 = vpack.c.b16 %v224, %v223
    %v243 = vpack.c.b16 %v226, %v225
    %v244 = vpack.c.b16 %v228, %v227
    %261 = vmatprep.subr.bf16.mxu0 0
    %262 = vmatpush1.bf16.msra.mxu0 %v236
    %263 = vmatprep.subr.bf16.mxu0 0
    %264 = vmatpush1.bf16.msra.mxu0 %v235
    %265 = vmatprep.subr.bf16.mxu0 0
    %266 = vmatpush1.bf16.msra.mxu0 %v234
    %267 = vmatprep.subr.bf16.mxu0 0
    %268 = vmatpush1.bf16.msra.mxu0 %v233
    %269 = vmatprep.subr.bf16.mxu0 0
    %270 = vmatpush1.bf16.msra.mxu0 %v232
    %271 = vmatprep.subr.bf16.mxu0 0
    %272 = vmatpush1.bf16.msra.mxu0 %v231
    %273 = vmatprep.subr.bf16.mxu0 0
    %274 = vmatpush1.bf16.msra.mxu0 %v230
    %275 = vmatprep.subr.bf16.mxu0 0
    %276 = vmatpush1.bf16.msra.mxu0 %v229
    %277 = vmatprep.subr.bf16.mxu0 0
    %278 = vmatpush2.bf16.msra.mxu0 %v244
    %279 = vmatprep.subr.bf16.mxu0 0
    %280 = vmatpush2.bf16.msra.mxu0 %v243
    %281 = vmatprep.subr.bf16.mxu0 0
    %282 = vmatpush2.bf16.msra.mxu0 %v242
    %283 = vmatprep.subr.bf16.mxu0 0
    %284 = vmatpush2.bf16.msra.mxu0 %v241
    %285 = vmatprep.subr.bf16.mxu0 0
    %286 = vmatpush2.bf16.msra.mxu0 %v240
    %287 = vmatprep.subr.bf16.mxu0 0
    %288 = vmatpush2.bf16.msra.mxu0 %v239
    %289 = vmatprep.subr.bf16.mxu0 0
    %290 = vmatpush2.bf16.msra.mxu0 %v238
    %291 = vmatprep.subr.bf16.mxu0 0
    %292 = vmatpush2.bf16.msra.mxu0 %v237
    %293 = vmatprep.mubr.bf16.mxu0 %v132
    %294 = vmatmul.mubr.bf16.gmra.mxu0 %v131
    %v295 = vpop.f32.mrf.mxu0
    %v296 = vadd.f32 0.0, %v295
    %v297 = vpop.f32.mrf.mxu0
    %v298 = vpop.f32.mrf.mxu0
    %v299 = vpop.f32.mrf.mxu0
    %300 = vdwg.mxu0
    %v301 = vld [vmem:[#allocation7 + $0x4] sm:$0x1]
    %v302 = vld [vmem:[#allocation7 + $0x5] sm:$0x1]
    %v303 = vrot.slane %v296, 4
    %v304 = vadd.f32 %v296, %v303
    %v305 = vrot.slane %v304, 2
    %v306 = vadd.f32 %v304, %v305
    %v307 = vrot.slane %v306, 1
    %v308 = vadd.f32 %v306, %v307
    %v309 = vmul.f32 %v308, 0.125
    %v310 = vsub.f32 %v296, %v309
    %v311 = vmul.f32 %v310, %v310
    %v312 = vrot.slane %v311, 4
    %v313 = vadd.f32 %v311, %v312
    %v314 = vrot.slane %v313, 2
    %v315 = vadd.f32 %v313, %v314
    %v316 = vrot.slane %v315, 1
    %v317 = vadd.f32 %v315, %v316
    %v318 = vmul.f32 %v317, 0.125
    %v319 = vadd.f32 %v318, 1e-05
    %v320 = vrsqrt.pop %v319
    %v321 = vmul.f32 %v301, %v320
    %v322 = vlaneseq
    %v323 = vshrl.u32 %v322, 7
    %v324 = vsub.s32 0, %v323
    %v325 = vrot.slane %v321, %v324
    %v326 = vmul.f32 %v310, %v325
    %v327 = vlaneseq
    %v328 = vshrl.u32 %v327, 7
    %v329 = vsub.s32 0, %v328
    %v330 = vrot.slane %v302, %v329
    %v331 = vadd.f32 %v326, %v330
    %v332 = vmax.f32 %v331, 0.0
    %v333 = vpack.c.bf16 %v332, %v332
    %s334 = scalar_lea.vmem [#allocation9], 128
    %v335 = vld [vmem:[%s334] sm:$0xf]
    %v336 = vld [vmem:[%s334 + $0x4] sm:$0xf]
    %v337 = vld [vmem:[%s334 + $0x8] sm:$0xf]
    %v338 = vld [vmem:[%s334 + $0xc] sm:$0xf]
    %v339 = vld [vmem:[%s334 + $0x10] sm:$0xf]
    %v340 = vld [vmem:[%s334 + $0x14] sm:$0xf]
    %v341 = vld [vmem:[%s334 + $0x18] sm:$0xf]
    %v342 = vld [vmem:[%s334 + $0x1c] sm:$0xf]
    %v343 = vld [vmem:[%s334 + $0x20] sm:$0xf]
    %v344 = vld [vmem:[%s334 + $0x24] sm:$0xf]
    %v345 = vld [vmem:[%s334 + $0x28] sm:$0xf]
    %v346 = vld [vmem:[%s334 + $0x2c] sm:$0xf]
    %v347 = vld [vmem:[%s334 + $0x30] sm:$0xf]
    %v348 = vld [vmem:[%s334 + $0x34] sm:$0xf]
    %v349 = vld [vmem:[%s334 + $0x38] sm:$0xf]
    %v350 = vld [vmem:[%s334 + $0x3c] sm:$0xf]
    %v367 = vunpack.c.l.b16 %v335
    %v368 = vunpack.c.l.b16 %v336
    %v369 = vunpack.c.l.b16 %v337
    %v370 = vunpack.c.l.b16 %v338
    %v371 = vunpack.c.l.b16 %v339
    %v372 = vunpack.c.l.b16 %v340
    %v373 = vunpack.c.l.b16 %v341
    %v374 = vunpack.c.l.b16 %v342
    %v375 = vunpack.c.l.b16 %v343
    %v376 = vunpack.c.l.b16 %v344
    %v377 = vunpack.c.l.b16 %v345
    %v378 = vunpack.c.l.b16 %v346
    %v379 = vunpack.c.l.b16 %v347
    %v380 = vunpack.c.l.b16 %v348
    %v381 = vunpack.c.l.b16 %v349
    %v382 = vunpack.c.l.b16 %v350
    %v383 = vpack.c.b16 %v368, %v367
    %v384 = vpack.c.b16 %v370, %v369
    %v385 = vpack.c.b16 %v372, %v371
    %v386 = vpack.c.b16 %v374, %v373
    %v387 = vpack.c.b16 %v376, %v375
    %v388 = vpack.c.b16 %v378, %v377
    %v389 = vpack.c.b16 %v380, %v379
    %v390 = vpack.c.b16 %v382, %v381
    %399 = vmatprep.subr.bf16.mxu0 0
    %400 = vmatpush1.bf16.msra.mxu0 %v390
    %401 = vmatprep.subr.bf16.mxu0 0
    %402 = vmatpush1.bf16.msra.mxu0 %v389
    %403 = vmatprep.subr.bf16.mxu0 0
    %404 = vmatpush1.bf16.msra.mxu0 %v388
    %405 = vmatprep.subr.bf16.mxu0 0
    %406 = vmatpush1.bf16.msra.mxu0 %v387
    %407 = vmatprep.subr.bf16.mxu0 0
    %408 = vmatpush1.bf16.msra.mxu0 %v386
    %409 = vmatprep.subr.bf16.mxu0 0
    %410 = vmatpush1.bf16.msra.mxu0 %v385
    %411 = vmatprep.subr.bf16.mxu0 0
    %412 = vmatpush1.bf16.msra.mxu0 %v384
    %413 = vmatprep.subr.bf16.mxu0 0
    %414 = vmatpush1.bf16.msra.mxu0 %v383
    %415 = vmatprep.subr.bf16.mxu0 0
    %416 = vmatpush2.bf16.msra.mxu0 0
    %417 = vmatprep.subr.bf16.mxu0 0
    %418 = vmatpush2.bf16.msra.mxu0 0
    %419 = vmatprep.subr.bf16.mxu0 0
    %420 = vmatpush2.bf16.msra.mxu0 0
    %421 = vmatprep.subr.bf16.mxu0 0
    %422 = vmatpush2.bf16.msra.mxu0 0
    %423 = vmatprep.subr.bf16.mxu0 0
    %424 = vmatpush2.bf16.msra.mxu0 0
    %425 = vmatprep.subr.bf16.mxu0 0
    %426 = vmatpush2.bf16.msra.mxu0 0
    %427 = vmatprep.subr.bf16.mxu0 0
    %428 = vmatpush2.bf16.msra.mxu0 0
    %429 = vmatprep.subr.bf16.mxu0 0
    %430 = vmatpush2.bf16.msra.mxu0 0
    %431 = vmatprep.mubr.bf16.mxu0 0
    %432 = vmatmul.mubr.bf16.gmra.mxu0 %v333
    %v433 = vpop.f32.mrf.mxu0
    %v434 = vadd.f32 0.0, %v433
    %v435 = vpop.f32.mrf.mxu0
    %v436 = vpop.f32.mrf.mxu0
    %v437 = vpop.f32.mrf.mxu0
    %438 = vdwg.mxu0
    %v439 = vld [vmem:[#allocation7 + $0x6] sm:$0x1]
    %v440 = vld [vmem:[#allocation7 + $0x7] sm:$0x1]
    %v441 = vrot.slane %v434, 4
    %v442 = vadd.f32 %v434, %v441
    %v443 = vrot.slane %v442, 2
    %v444 = vadd.f32 %v442, %v443
    %v445 = vrot.slane %v444, 1
    %v446 = vadd.f32 %v444, %v445
    %v447 = vmul.f32 %v446, 0.125
    %v448 = vsub.f32 %v434, %v447
    %v449 = vmul.f32 %v448, %v448
    %v450 = vrot.slane %v449, 4
    %v451 = vadd.f32 %v449, %v450
    %v452 = vrot.slane %v451, 2
    %v453 = vadd.f32 %v451, %v452
    %v454 = vrot.slane %v453, 1
    %v455 = vadd.f32 %v453, %v454
    %v456 = vmul.f32 %v455, 0.125
    %v457 = vadd.f32 %v456, 1e-05
    %v458 = vrsqrt.pop %v457
    %v459 = vmul.f32 %v439, %v458
    %v460 = vlaneseq
    %v461 = vshrl.u32 %v460, 7
    %v462 = vsub.s32 0, %v461
    %v463 = vrot.slane %v459, %v462
    %v464 = vmul.f32 %v448, %v463
    %v465 = vlaneseq
    %v466 = vshrl.u32 %v465, 7
    %v467 = vsub.s32 0, %v466
    %v468 = vrot.slane %v440, %v467
    %v469 = vadd.f32 %v464, %v468
    %v470 = vmax.f32 %v469, 0.0
    %v471 = vpack.c.bf16 %v470, %v470
    %s472 = scalar_lea.vmem [#allocation9], 256
    %v473 = vld [vmem:[%s472] sm:$0xf]
    %v474 = vld [vmem:[%s472 + $0x4] sm:$0xf]
    %v475 = vld [vmem:[%s472 + $0x8] sm:$0xf]
    %v476 = vld [vmem:[%s472 + $0xc] sm:$0xf]
    %v477 = vld [vmem:[%s472 + $0x10] sm:$0xf]
    %v478 = vld [vmem:[%s472 + $0x14] sm:$0xf]
    %v479 = vld [vmem:[%s472 + $0x18] sm:$0xf]
    %v480 = vld [vmem:[%s472 + $0x1c] sm:$0xf]
    %v481 = vld [vmem:[%s472 + $0x20] sm:$0xf]
    %v482 = vld [vmem:[%s472 + $0x24] sm:$0xf]
    %v483 = vld [vmem:[%s472 + $0x28] sm:$0xf]
    %v484 = vld [vmem:[%s472 + $0x2c] sm:$0xf]
    %v485 = vld [vmem:[%s472 + $0x30] sm:$0xf]
    %v486 = vld [vmem:[%s472 + $0x34] sm:$0xf]
    %v487 = vld [vmem:[%s472 + $0x38] sm:$0xf]
    %v488 = vld [vmem:[%s472 + $0x3c] sm:$0xf]
    %v505 = vunpack.c.l.b16 %v473
    %v506 = vunpack.c.l.b16 %v474
    %v507 = vunpack.c.l.b16 %v475
    %v508 = vunpack.c.l.b16 %v476
    %v509 = vunpack.c.l.b16 %v477
    %v510 = vunpack.c.l.b16 %v478
    %v511 = vunpack.c.l.b16 %v479
    %v512 = vunpack.c.l.b16 %v480
    %v513 = vunpack.c.l.b16 %v481
    %v514 = vunpack.c.l.b16 %v482
    %v515 = vunpack.c.l.b16 %v483
    %v516 = vunpack.c.l.b16 %v484
    %v517 = vunpack.c.l.b16 %v485
    %v518 = vunpack.c.l.b16 %v486
    %v519 = vunpack.c.l.b16 %v487
    %v520 = vunpack.c.l.b16 %v488
    %v521 = vpack.c.b16 %v506, %v505
    %v522 = vpack.c.b16 %v508, %v507
    %v523 = vpack.c.b16 %v510, %v509
    %v524 = vpack.c.b16 %v512, %v511
    %v525 = vpack.c.b16 %v514, %v513
    %v526 = vpack.c.b16 %v516, %v515
    %v527 = vpack.c.b16 %v518, %v517
    %v528 = vpack.c.b16 %v520, %v519
    %537 = vmatprep.subr.bf16.mxu0 0
    %538 = vmatpush1.bf16.msra.mxu0 %v528
    %539 = vmatprep.subr.bf16.mxu0 0
    %540 = vmatpush1.bf16.msra.mxu0 %v527
    %541 = vmatprep.subr.bf16.mxu0 0
    %542 = vmatpush1.bf16.msra.mxu0 %v526
    %543 = vmatprep.subr.bf16.mxu0 0
    %544 = vmatpush1.bf16.msra.mxu0 %v525
    %545 = vmatprep.subr.bf16.mxu0 0
    %546 = vmatpush1.bf16.msra.mxu0 %v524
    %547 = vmatprep.subr.bf16.mxu0 0
    %548 = vmatpush1.bf16.msra.mxu0 %v523
    %549 = vmatprep.subr.bf16.mxu0 0
    %550 = vmatpush1.bf16.msra.mxu0 %v522
    %551 = vmatprep.subr.bf16.mxu0 0
    %552 = vmatpush1.bf16.msra.mxu0 %v521
    %553 = vmatprep.subr.bf16.mxu0 0
    %554 = vmatpush2.bf16.msra.mxu0 0
    %555 = vmatprep.subr.bf16.mxu0 0
    %556 = vmatpush2.bf16.msra.mxu0 0
    %557 = vmatprep.subr.bf16.mxu0 0
    %558 = vmatpush2.bf16.msra.mxu0 0
    %559 = vmatprep.subr.bf16.mxu0 0
    %560 = vmatpush2.bf16.msra.mxu0 0
    %561 = vmatprep.subr.bf16.mxu0 0
    %562 = vmatpush2.bf16.msra.mxu0 0
    %563 = vmatprep.subr.bf16.mxu0 0
    %564 = vmatpush2.bf16.msra.mxu0 0
    %565 = vmatprep.subr.bf16.mxu0 0
    %566 = vmatpush2.bf16.msra.mxu0 0
    %567 = vmatprep.subr.bf16.mxu0 0
    %568 = vmatpush2.bf16.msra.mxu0 0
    %569 = vmatprep.mubr.bf16.mxu0 0
    %570 = vmatmul.mubr.bf16.gmra.mxu0 %v471
    %v571 = vpop.f32.mrf.mxu0
    %v572 = vadd.f32 0.0, %v571
    %v573 = vpop.f32.mrf.mxu0
    %v574 = vpop.f32.mrf.mxu0
    %v575 = vpop.f32.mrf.mxu0
    %576 = vdwg.mxu0
    %v577 = vld [vmem:[#allocation7 + $0x8] sm:$0x1]
    %v578 = vld [vmem:[#allocation7 + $0x9] sm:$0x1]
    %v579 = vrot.slane %v572, 4
    %v580 = vadd.f32 %v572, %v579
    %v581 = vrot.slane %v580, 2
    %v582 = vadd.f32 %v580, %v581
    %v583 = vrot.slane %v582, 1
    %v584 = vadd.f32 %v582, %v583
    %v585 = vmul.f32 %v584, 0.125
    %v586 = vsub.f32 %v572, %v585
    %v587 = vmul.f32 %v586, %v586
    %v588 = vrot.slane %v587, 4
    %v589 = vadd.f32 %v587, %v588
    %v590 = vrot.slane %v589, 2
    %v591 = vadd.f32 %v589, %v590
    %v592 = vrot.slane %v591, 1
    %v593 = vadd.f32 %v591, %v592
    %v594 = vmul.f32 %v593, 0.125
    %v595 = vadd.f32 %v594, 1e-05
    %v596 = vrsqrt.pop %v595
    %v597 = vmul.f32 %v577, %v596
    %v598 = vlaneseq
    %v599 = vshrl.u32 %v598, 7
    %v600 = vsub.s32 0, %v599
    %v601 = vrot.slane %v597, %v600
    %v602 = vmul.f32 %v586, %v601
    %v603 = vlaneseq
    %v604 = vshrl.u32 %v603, 7
    %v605 = vsub.s32 0, %v604
    %v606 = vrot.slane %v578, %v605
    %v607 = vadd.f32 %v602, %v606
    %v608 = vmax.f32 %v607, 0.0
    %v609 = vpack.c.bf16 %v608, %v608
    %s610 = scalar_lea.vmem [#allocation9], 384
    %v611 = vld [vmem:[%s610] sm:$0xf]
    %v612 = vld [vmem:[%s610 + $0x4] sm:$0xf]
    %v613 = vld [vmem:[%s610 + $0x8] sm:$0xf]
    %v614 = vld [vmem:[%s610 + $0xc] sm:$0xf]
    %v615 = vld [vmem:[%s610 + $0x10] sm:$0xf]
    %v616 = vld [vmem:[%s610 + $0x14] sm:$0xf]
    %v617 = vld [vmem:[%s610 + $0x18] sm:$0xf]
    %v618 = vld [vmem:[%s610 + $0x1c] sm:$0xf]
    %v619 = vld [vmem:[%s610 + $0x20] sm:$0xf]
    %v620 = vld [vmem:[%s610 + $0x24] sm:$0xf]
    %v621 = vld [vmem:[%s610 + $0x28] sm:$0xf]
    %v622 = vld [vmem:[%s610 + $0x2c] sm:$0xf]
    %v623 = vld [vmem:[%s610 + $0x30] sm:$0xf]
    %v624 = vld [vmem:[%s610 + $0x34] sm:$0xf]
    %v625 = vld [vmem:[%s610 + $0x38] sm:$0xf]
    %v626 = vld [vmem:[%s610 + $0x3c] sm:$0xf]
    %v643 = vunpack.c.l.b16 %v611
    %v644 = vunpack.c.l.b16 %v612
    %v645 = vunpack.c.l.b16 %v613
    %v646 = vunpack.c.l.b16 %v614
    %v647 = vunpack.c.l.b16 %v615
    %v648 = vunpack.c.l.b16 %v616
    %v649 = vunpack.c.l.b16 %v617
    %v650 = vunpack.c.l.b16 %v618
    %v651 = vunpack.c.l.b16 %v619
    %v652 = vunpack.c.l.b16 %v620
    %v653 = vunpack.c.l.b16 %v621
    %v654 = vunpack.c.l.b16 %v622
    %v655 = vunpack.c.l.b16 %v623
    %v656 = vunpack.c.l.b16 %v624
    %v657 = vunpack.c.l.b16 %v625
    %v658 = vunpack.c.l.b16 %v626
    %v659 = vpack.c.b16 %v644, %v643
    %v660 = vpack.c.b16 %v646, %v645
    %v661 = vpack.c.b16 %v648, %v647
    %v662 = vpack.c.b16 %v650, %v649
    %v663 = vpack.c.b16 %v652, %v651
    %v664 = vpack.c.b16 %v654, %v653
    %v665 = vpack.c.b16 %v656, %v655
    %v666 = vpack.c.b16 %v658, %v657
    %675 = vmatprep.subr.bf16.mxu0 0
    %676 = vmatpush1.bf16.msra.mxu0 %v666
    %677 = vmatprep.subr.bf16.mxu0 0
    %678 = vmatpush1.bf16.msra.mxu0 %v665
    %679 = vmatprep.subr.bf16.mxu0 0
    %680 = vmatpush1.bf16.msra.mxu0 %v664
    %681 = vmatprep.subr.bf16.mxu0 0
    %682 = vmatpush1.bf16.msra.mxu0 %v663
    %683 = vmatprep.subr.bf16.mxu0 0
    %684 = vmatpush1.bf16.msra.mxu0 %v662
    %685 = vmatprep.subr.bf16.mxu0 0
    %686 = vmatpush1.bf16.msra.mxu0 %v661
    %687 = vmatprep.subr.bf16.mxu0 0
    %688 = vmatpush1.bf16.msra.mxu0 %v660
    %689 = vmatprep.subr.bf16.mxu0 0
    %690 = vmatpush1.bf16.msra.mxu0 %v659
    %691 = vmatprep.subr.bf16.mxu0 0
    %692 = vmatpush2.bf16.msra.mxu0 0
    %693 = vmatprep.subr.bf16.mxu0 0
    %694 = vmatpush2.bf16.msra.mxu0 0
    %695 = vmatprep.subr.bf16.mxu0 0
    %696 = vmatpush2.bf16.msra.mxu0 0
    %697 = vmatprep.subr.bf16.mxu0 0
    %698 = vmatpush2.bf16.msra.mxu0 0
    %699 = vmatprep.subr.bf16.mxu0 0
    %700 = vmatpush2.bf16.msra.mxu0 0
    %701 = vmatprep.subr.bf16.mxu0 0
    %702 = vmatpush2.bf16.msra.mxu0 0
    %703 = vmatprep.subr.bf16.mxu0 0
    %704 = vmatpush2.bf16.msra.mxu0 0
    %705 = vmatprep.subr.bf16.mxu0 0
    %706 = vmatpush2.bf16.msra.mxu0 0
    %707 = vmatprep.mubr.bf16.mxu0 0
    %708 = vmatmul.mubr.bf16.gmra.mxu0 %v609
    %v709 = vpop.f32.mrf.mxu0
    %v710 = vadd.f32 0.0, %v709
    %v711 = vpop.f32.mrf.mxu0
    %v712 = vpop.f32.mrf.mxu0
    %v713 = vpop.f32.mrf.mxu0
    %714 = vdwg.mxu0
    %v715 = vld [vmem:[#allocation7 + $0xa] sm:$0x1]
    %v716 = vld [vmem:[#allocation7 + $0xb] sm:$0x1]
    %v717 = vrot.slane %v710, 4
    %v718 = vadd.f32 %v710, %v717
    %v719 = vrot.slane %v718, 2
    %v720 = vadd.f32 %v718, %v719
    %v721 = vrot.slane %v720, 1
    %v722 = vadd.f32 %v720, %v721
    %v723 = vmul.f32 %v722, 0.125
    %v724 = vsub.f32 %v710, %v723
    %v725 = vmul.f32 %v724, %v724
    %v726 = vrot.slane %v725, 4
    %v727 = vadd.f32 %v725, %v726
    %v728 = vrot.slane %v727, 2
    %v729 = vadd.f32 %v727, %v728
    %v730 = vrot.slane %v729, 1
    %v731 = vadd.f32 %v729, %v730
    %v732 = vmul.f32 %v731, 0.125
    %v733 = vadd.f32 %v732, 1e-05
    %v734 = vrsqrt.pop %v733
    %v735 = vmul.f32 %v715, %v734
    %v736 = vlaneseq
    %v737 = vshrl.u32 %v736, 7
    %v738 = vsub.s32 0, %v737
    %v739 = vrot.slane %v735, %v738
    %v740 = vmul.f32 %v724, %v739
    %v741 = vlaneseq
    %v742 = vshrl.u32 %v741, 7
    %v743 = vsub.s32 0, %v742
    %v744 = vrot.slane %v716, %v743
    %v745 = vadd.f32 %v740, %v744
    %v746 = vmax.f32 %v745, 0.0
    %v747 = vpack.c.bf16 %v746, %v746
    %s748 = scalar_lea.vmem [#allocation9], 512
    %v749 = vld [vmem:[%s748] sm:$0xf]
    %v750 = vld [vmem:[%s748 + $0x4] sm:$0xf]
    %v751 = vld [vmem:[%s748 + $0x8] sm:$0xf]
    %v752 = vld [vmem:[%s748 + $0xc] sm:$0xf]
    %v753 = vld [vmem:[%s748 + $0x10] sm:$0xf]
    %v754 = vld [vmem:[%s748 + $0x14] sm:$0xf]
    %v755 = vld [vmem:[%s748 + $0x18] sm:$0xf]
    %v756 = vld [vmem:[%s748 + $0x1c] sm:$0xf]
    %v757 = vld [vmem:[%s748 + $0x20] sm:$0xf]
    %v758 = vld [vmem:[%s748 + $0x24] sm:$0xf]
    %v759 = vld [vmem:[%s748 + $0x28] sm:$0xf]
    %v760 = vld [vmem:[%s748 + $0x2c] sm:$0xf]
    %v761 = vld [vmem:[%s748 + $0x30] sm:$0xf]
    %v762 = vld [vmem:[%s748 + $0x34] sm:$0xf]
    %v763 = vld [vmem:[%s748 + $0x38] sm:$0xf]
    %v764 = vld [vmem:[%s748 + $0x3c] sm:$0xf]
    %v781 = vunpack.c.l.b16 %v749
    %v782 = vunpack.c.l.b16 %v750
    %v783 = vunpack.c.l.b16 %v751
    %v784 = vunpack.c.l.b16 %v752
    %v785 = vunpack.c.l.b16 %v753
    %v786 = vunpack.c.l.b16 %v754
    %v787 = vunpack.c.l.b16 %v755
    %v788 = vunpack.c.l.b16 %v756
    %v789 = vunpack.c.l.b16 %v757
    %v790 = vunpack.c.l.b16 %v758
    %v791 = vunpack.c.l.b16 %v759
    %v792 = vunpack.c.l.b16 %v760
    %v793 = vunpack.c.l.b16 %v761
    %v794 = vunpack.c.l.b16 %v762
    %v795 = vunpack.c.l.b16 %v763
    %v796 = vunpack.c.l.b16 %v764
    %v797 = vpack.c.b16 %v782, %v781
    %v798 = vpack.c.b16 %v784, %v783
    %v799 = vpack.c.b16 %v786, %v785
    %v800 = vpack.c.b16 %v788, %v787
    %v801 = vpack.c.b16 %v790, %v789
    %v802 = vpack.c.b16 %v792, %v791
    %v803 = vpack.c.b16 %v794, %v793
    %v804 = vpack.c.b16 %v796, %v795
    %813 = vmatprep.subr.bf16.mxu0 0
    %814 = vmatpush1.bf16.msra.mxu0 %v804
    %815 = vmatprep.subr.bf16.mxu0 0
    %816 = vmatpush1.bf16.msra.mxu0 %v803
    %817 = vmatprep.subr.bf16.mxu0 0
    %818 = vmatpush1.bf16.msra.mxu0 %v802
    %819 = vmatprep.subr.bf16.mxu0 0
    %820 = vmatpush1.bf16.msra.mxu0 %v801
    %821 = vmatprep.subr.bf16.mxu0 0
    %822 = vmatpush1.bf16.msra.mxu0 %v800
    %823 = vmatprep.subr.bf16.mxu0 0
    %824 = vmatpush1.bf16.msra.mxu0 %v799
    %825 = vmatprep.subr.bf16.mxu0 0
    %826 = vmatpush1.bf16.msra.mxu0 %v798
    %827 = vmatprep.subr.bf16.mxu0 0
    %828 = vmatpush1.bf16.msra.mxu0 %v797
    %829 = vmatprep.subr.bf16.mxu0 0
    %830 = vmatpush2.bf16.msra.mxu0 0
    %831 = vmatprep.subr.bf16.mxu0 0
    %832 = vmatpush2.bf16.msra.mxu0 0
    %833 = vmatprep.subr.bf16.mxu0 0
    %834 = vmatpush2.bf16.msra.mxu0 0
    %835 = vmatprep.subr.bf16.mxu0 0
    %836 = vmatpush2.bf16.msra.mxu0 0
    %837 = vmatprep.subr.bf16.mxu0 0
    %838 = vmatpush2.bf16.msra.mxu0 0
    %839 = vmatprep.subr.bf16.mxu0 0
    %840 = vmatpush2.bf16.msra.mxu0 0
    %841 = vmatprep.subr.bf16.mxu0 0
    %842 = vmatpush2.bf16.msra.mxu0 0
    %843 = vmatprep.subr.bf16.mxu0 0
    %844 = vmatpush2.bf16.msra.mxu0 0
    %845 = vmatprep.mubr.bf16.mxu0 0
    %846 = vmatmul.mubr.bf16.gmra.mxu0 %v747
    %v847 = vpop.f32.mrf.mxu0
    %v848 = vadd.f32 0.0, %v847
    %v849 = vpop.f32.mrf.mxu0
    %v850 = vpop.f32.mrf.mxu0
    %v851 = vpop.f32.mrf.mxu0
    %852 = vdwg.mxu0
    %v853 = vld [vmem:[#allocation7 + $0xc] sm:$0x1]
    %v854 = vld [vmem:[#allocation7 + $0xd] sm:$0x1]
    %v855 = vrot.slane %v848, 4
    %v856 = vadd.f32 %v848, %v855
    %v857 = vrot.slane %v856, 2
    %v858 = vadd.f32 %v856, %v857
    %v859 = vrot.slane %v858, 1
    %v860 = vadd.f32 %v858, %v859
    %v861 = vmul.f32 %v860, 0.125
    %v862 = vsub.f32 %v848, %v861
    %v863 = vmul.f32 %v862, %v862
    %v864 = vrot.slane %v863, 4
    %v865 = vadd.f32 %v863, %v864
    %v866 = vrot.slane %v865, 2
    %v867 = vadd.f32 %v865, %v866
    %v868 = vrot.slane %v867, 1
    %v869 = vadd.f32 %v867, %v868
    %v870 = vmul.f32 %v869, 0.125
    %v871 = vadd.f32 %v870, 1e-05
    %v872 = vrsqrt.pop %v871
    %v873 = vmul.f32 %v853, %v872
    %v874 = vlaneseq
    %v875 = vshrl.u32 %v874, 7
    %v876 = vsub.s32 0, %v875
    %v877 = vrot.slane %v873, %v876
    %v878 = vmul.f32 %v862, %v877
    %v879 = vlaneseq
    %v880 = vshrl.u32 %v879, 7
    %v881 = vsub.s32 0, %v880
    %v882 = vrot.slane %v854, %v881
    %v883 = vadd.f32 %v878, %v882
    %v884 = vpack.c.bf16 %v883, %v883
    %s885 = scalar_lea.vmem [#allocation9], 640
    %v886 = vld [vmem:[%s885] sm:$0xf]
    %v887 = vld [vmem:[%s885 + $0x4] sm:$0xf]
    %v888 = vld [vmem:[%s885 + $0x8] sm:$0xf]
    %v889 = vld [vmem:[%s885 + $0xc] sm:$0xf]
    %v890 = vld [vmem:[%s885 + $0x10] sm:$0xf]
    %v891 = vld [vmem:[%s885 + $0x14] sm:$0xf]
    %v892 = vld [vmem:[%s885 + $0x18] sm:$0xf]
    %v893 = vld [vmem:[%s885 + $0x1c] sm:$0xf]
    %v894 = vld [vmem:[%s885 + $0x20] sm:$0xf]
    %v895 = vld [vmem:[%s885 + $0x24] sm:$0xf]
    %v896 = vld [vmem:[%s885 + $0x28] sm:$0xf]
    %v897 = vld [vmem:[%s885 + $0x2c] sm:$0xf]
    %v898 = vld [vmem:[%s885 + $0x30] sm:$0xf]
    %v899 = vld [vmem:[%s885 + $0x34] sm:$0xf]
    %v900 = vld [vmem:[%s885 + $0x38] sm:$0xf]
    %v901 = vld [vmem:[%s885 + $0x3c] sm:$0xf]
    %v918 = vunpack.c.l.b16 %v886
    %v919 = vunpack.c.l.b16 %v887
    %v920 = vunpack.c.l.b16 %v888
    %v921 = vunpack.c.l.b16 %v889
    %v922 = vunpack.c.l.b16 %v890
    %v923 = vunpack.c.l.b16 %v891
    %v924 = vunpack.c.l.b16 %v892
    %v925 = vunpack.c.l.b16 %v893
    %v926 = vunpack.c.l.b16 %v894
    %v927 = vunpack.c.l.b16 %v895
    %v928 = vunpack.c.l.b16 %v896
    %v929 = vunpack.c.l.b16 %v897
    %v930 = vunpack.c.l.b16 %v898
    %v931 = vunpack.c.l.b16 %v899
    %v932 = vunpack.c.l.b16 %v900
    %v933 = vunpack.c.l.b16 %v901
    %v934 = vpack.c.b16 %v919, %v918
    %v935 = vpack.c.b16 %v921, %v920
    %v936 = vpack.c.b16 %v923, %v922
    %v937 = vpack.c.b16 %v925, %v924
    %v938 = vpack.c.b16 %v927, %v926
    %v939 = vpack.c.b16 %v929, %v928
    %v940 = vpack.c.b16 %v931, %v930
    %v941 = vpack.c.b16 %v933, %v932
    %950 = vmatprep.subr.bf16.mxu0 0
    %951 = vmatpush1.bf16.msra.mxu0 %v941
    %952 = vmatprep.subr.bf16.mxu0 0
    %953 = vmatpush1.bf16.msra.mxu0 %v940
    %954 = vmatprep.subr.bf16.mxu0 0
    %955 = vmatpush1.bf16.msra.mxu0 %v939
    %956 = vmatprep.subr.bf16.mxu0 0
    %957 = vmatpush1.bf16.msra.mxu0 %v938
    %958 = vmatprep.subr.bf16.mxu0 0
    %959 = vmatpush1.bf16.msra.mxu0 %v937
    %960 = vmatprep.subr.bf16.mxu0 0
    %961 = vmatpush1.bf16.msra.mxu0 %v936
    %962 = vmatprep.subr.bf16.mxu0 0
    %963 = vmatpush1.bf16.msra.mxu0 %v935
    %964 = vmatprep.subr.bf16.mxu0 0
    %965 = vmatpush1.bf16.msra.mxu0 %v934
    %966 = vmatprep.subr.bf16.mxu0 0
    %967 = vmatpush2.bf16.msra.mxu0 0
    %968 = vmatprep.subr.bf16.mxu0 0
    %969 = vmatpush2.bf16.msra.mxu0 0
    %970 = vmatprep.subr.bf16.mxu0 0
    %971 = vmatpush2.bf16.msra.mxu0 0
    %972 = vmatprep.subr.bf16.mxu0 0
    %973 = vmatpush2.bf16.msra.mxu0 0
    %974 = vmatprep.subr.bf16.mxu0 0
    %975 = vmatpush2.bf16.msra.mxu0 0
    %976 = vmatprep.subr.bf16.mxu0 0
    %977 = vmatpush2.bf16.msra.mxu0 0
    %978 = vmatprep.subr.bf16.mxu0 0
    %979 = vmatpush2.bf16.msra.mxu0 0
    %980 = vmatprep.subr.bf16.mxu0 0
    %981 = vmatpush2.bf16.msra.mxu0 0
    %982 = vmatprep.mubr.bf16.mxu0 0
    %983 = vmatmul.mubr.bf16.gmra.mxu0 %v884
    %v984 = vpop.f32.mrf.mxu0
    %v985 = vadd.f32 0.0, %v984
    %v986 = vpop.f32.mrf.mxu0
    %v987 = vpop.f32.mrf.mxu0
    %v988 = vpop.f32.mrf.mxu0
    %989 = vdwg.mxu0
    %v990 = vld [vmem:[#allocation7 + $0xe] sm:$0x1]
    %v991 = vld [vmem:[#allocation7 + $0xf] sm:$0x1]
    %v992 = vrot.slane %v985, 4
    %v993 = vadd.f32 %v985, %v992
    %v994 = vrot.slane %v993, 2
    %v995 = vadd.f32 %v993, %v994
    %v996 = vrot.slane %v995, 1
    %v997 = vadd.f32 %v995, %v996
    %v998 = vmul.f32 %v997, 0.125
    %v999 = vsub.f32 %v985, %v998
    %v1000 = vmul.f32 %v999, %v999
    %v1001 = vrot.slane %v1000, 4
    %v1002 = vadd.f32 %v1000, %v1001
    %v1003 = vrot.slane %v1002, 2
    %v1004 = vadd.f32 %v1002, %v1003
    %v1005 = vrot.slane %v1004, 1
    %v1006 = vadd.f32 %v1004, %v1005
    %v1007 = vmul.f32 %v1006, 0.125
    %v1008 = vadd.f32 %v1007, 1e-05
    %v1009 = vrsqrt.pop %v1008
    %v1010 = vmul.f32 %v990, %v1009
    %v1011 = vlaneseq
    %v1012 = vshrl.u32 %v1011, 7
    %v1013 = vsub.s32 0, %v1012
    %v1014 = vrot.slane %v1010, %v1013
    %v1015 = vmul.f32 %v999, %v1014
    %v1016 = vlaneseq
    %v1017 = vshrl.u32 %v1016, 7
    %v1018 = vsub.s32 0, %v1017
    %v1019 = vrot.slane %v991, %v1018
    %v1020 = vadd.f32 %v1015, %v1019
    %v1021 = vmax.f32 %v1020, 0.0
    %v1022 = vpack.c.bf16 %v1021, %v1021
    %s1023 = scalar_lea.vmem [#allocation9], 768
    %v1024 = vld [vmem:[%s1023] sm:$0xf]
    %v1025 = vld [vmem:[%s1023 + $0x4] sm:$0xf]
    %v1026 = vld [vmem:[%s1023 + $0x8] sm:$0xf]
    %v1027 = vld [vmem:[%s1023 + $0xc] sm:$0xf]
    %v1028 = vld [vmem:[%s1023 + $0x10] sm:$0xf]
    %v1029 = vld [vmem:[%s1023 + $0x14] sm:$0xf]
    %v1030 = vld [vmem:[%s1023 + $0x18] sm:$0xf]
    %v1031 = vld [vmem:[%s1023 + $0x1c] sm:$0xf]
    %v1032 = vld [vmem:[%s1023 + $0x20] sm:$0xf]
    %v1033 = vld [vmem:[%s1023 + $0x24] sm:$0xf]
    %v1034 = vld [vmem:[%s1023 + $0x28] sm:$0xf]
    %v1035 = vld [vmem:[%s1023 + $0x2c] sm:$0xf]
    %v1036 = vld [vmem:[%s1023 + $0x30] sm:$0xf]
    %v1037 = vld [vmem:[%s1023 + $0x34] sm:$0xf]
    %v1038 = vld [vmem:[%s1023 + $0x38] sm:$0xf]
    %v1039 = vld [vmem:[%s1023 + $0x3c] sm:$0xf]
    %v1040 = vld [vmem:[#allocation7 + $0x10] sm:$0x1]
    %v1041 = vlaneseq
    %v1042 = vshrl.u32 %v1041, 7
    %v1043 = vsub.s32 0, %v1042
    %v1044 = vrot.slane %v1040, %v1043
    %v1061 = vunpack.c.l.b16 %v1024
    %v1062 = vunpack.c.l.b16 %v1025
    %v1063 = vunpack.c.l.b16 %v1026
    %v1064 = vunpack.c.l.b16 %v1027
    %v1065 = vunpack.c.l.b16 %v1028
    %v1066 = vunpack.c.l.b16 %v1029
    %v1067 = vunpack.c.l.b16 %v1030
    %v1068 = vunpack.c.l.b16 %v1031
    %v1069 = vunpack.c.l.b16 %v1032
    %v1070 = vunpack.c.l.b16 %v1033
    %v1071 = vunpack.c.l.b16 %v1034
    %v1072 = vunpack.c.l.b16 %v1035
    %v1073 = vunpack.c.l.b16 %v1036
    %v1074 = vunpack.c.l.b16 %v1037
    %v1075 = vunpack.c.l.b16 %v1038
    %v1076 = vunpack.c.l.b16 %v1039
    %v1077 = vpack.c.b16 %v1062, %v1061
    %v1078 = vpack.c.b16 %v1064, %v1063
    %v1079 = vpack.c.b16 %v1066, %v1065
    %v1080 = vpack.c.b16 %v1068, %v1067
    %v1081 = vpack.c.b16 %v1070, %v1069
    %v1082 = vpack.c.b16 %v1072, %v1071
    %v1083 = vpack.c.b16 %v1074, %v1073
    %v1084 = vpack.c.b16 %v1076, %v1075
    %1093 = vmatprep.subr.bf16.mxu0 0
    %1094 = vmatpush1.bf16.msra.mxu0 %v1084
    %1095 = vmatprep.subr.bf16.mxu0 0
    %1096 = vmatpush1.bf16.msra.mxu0 %v1083
    %1097 = vmatprep.subr.bf16.mxu0 0
    %1098 = vmatpush1.bf16.msra.mxu0 %v1082
    %1099 = vmatprep.subr.bf16.mxu0 0
    %1100 = vmatpush1.bf16.msra.mxu0 %v1081
    %1101 = vmatprep.subr.bf16.mxu0 0
    %1102 = vmatpush1.bf16.msra.mxu0 %v1080
    %1103 = vmatprep.subr.bf16.mxu0 0
    %1104 = vmatpush1.bf16.msra.mxu0 %v1079
    %1105 = vmatprep.subr.bf16.mxu0 0
    %1106 = vmatpush1.bf16.msra.mxu0 %v1078
    %1107 = vmatprep.subr.bf16.mxu0 0
    %1108 = vmatpush1.bf16.msra.mxu0 %v1077
    %1109 = vmatprep.subr.bf16.mxu0 0
    %1110 = vmatpush2.bf16.msra.mxu0 0
    %1111 = vmatprep.subr.bf16.mxu0 0
    %1112 = vmatpush2.bf16.msra.mxu0 0
    %1113 = vmatprep.subr.bf16.mxu0 0
    %1114 = vmatpush2.bf16.msra.mxu0 0
    %1115 = vmatprep.subr.bf16.mxu0 0
    %1116 = vmatpush2.bf16.msra.mxu0 0
    %1117 = vmatprep.subr.bf16.mxu0 0
    %1118 = vmatpush2.bf16.msra.mxu0 0
    %1119 = vmatprep.subr.bf16.mxu0 0
    %1120 = vmatpush2.bf16.msra.mxu0 0
    %1121 = vmatprep.subr.bf16.mxu0 0
    %1122 = vmatpush2.bf16.msra.mxu0 0
    %1123 = vmatprep.subr.bf16.mxu0 0
    %1124 = vmatpush2.bf16.msra.mxu0 0
    %1125 = vmatprep.mubr.bf16.mxu0 0
    %1126 = vmatmul.mubr.bf16.gmra.mxu0 %v1022
    %v1127 = vpop.f32.mrf.mxu0
    %v1128 = vadd.f32 %v1044, %v1127
    %v1129 = vpop.f32.mrf.mxu0
    %v1130 = vpop.f32.mrf.mxu0
    %v1131 = vpop.f32.mrf.mxu0
    %1132 = vdwg.mxu0
    %1133 = vst [vmem:[#allocation10] sm:$0xff] %v1128
    // Predicated region
    $region34: #{tpu_custom_call.1} parent=1 // pred_check
      _
    $region35: #{tpu_custom_call.1} parent=1 // pred_check_branch
      %1135 = sbr.rel (0) target = $region37
    $region36: #{tpu_custom_call.1} parent=1 // pred_region
      %s1137 = ssub.s32 128, 128
      %1138 = vsyncadd [#allocation4], %s1137
      %s1140 = sshll.u32 [#allocation10], 4
      %s1141 = int_to_ptr.vmem [resolvable:$true] %s1140
      %1143 = dma.vmem_to_hbm [thread:$0]  %s1141, 128, %s4, [#allocation4]
    $region37: #{tpu_custom_call.1} parent=1 // pred_fallthru
      _
    // Predicated region
    $region38: #{tpu_custom_call.1} parent=1 // pred_check
      _
    $region39: #{tpu_custom_call.1} parent=1 // pred_check_branch
      %1145 = sbr.rel (0) target = $region41
    $region40: #{tpu_custom_call.1} parent=1 // pred_region
      %1146 = dma.done [#allocation4], 128
    $region41: #{tpu_custom_call.1} parent=1 // pred_fallthru
      _
    %1147 = vsyncpa [#allocation3], 1
    %1148 = vsyncpa [#allocation8], 1
    %1149 = vsyncpa [#allocation4], 1
    %1150 = vsyncpa [#allocation5], 1

</llo_original>
